<compile_context>
chip_gen: v6e
topology: v6e:2x2x1
jax: 0.10.0
libtpu: 0.0.40
codegen_flags: <defaults>
</compile_context>

<pallas_src>
import functools

import jax
import jax.numpy as jnp
from jax import lax
from jax.experimental import pallas as pl
from jax.experimental.pallas import tpu as pltpu


def _round_up(x, m):
    return ((x + m - 1) // m) * m


# ----------------------------------------------------------------------------
# Kernel 1: per-class sufficient statistics (sum, sum of squares, count)
# ----------------------------------------------------------------------------
def _class_stats_kernel(feat_ref, lab_ref, sumf_ref, sumsq_ref, cnt_ref,
                        *, num_classes_p1):
    s = pl.program_id(1)

    @pl.when(s == 0)
    def _():
        sumf_ref[...] = jnp.zeros_like(sumf_ref)
        sumsq_ref[...] = jnp.zeros_like(sumsq_ref)
        cnt_ref[...] = jnp.zeros_like(cnt_ref)

    lab = lab_ref[...]                                        # (1, tn) int32
    tn = lab.shape[1]
    # 255 -> extra class; padding sentinel (-1) matches no class -> contributes 0.
    lab_m = jnp.where(lab == 255, num_classes_p1 - 1, lab)
    classes = lax.broadcasted_iota(jnp.int32, (num_classes_p1, tn), 0)
    onehot_t = (classes == lab_m).astype(jnp.float32)         # (Cp1, tn)

    f = feat_ref[...]                                         # (tn, A) f32
    sumf_ref[...] += jnp.dot(onehot_t, f, preferred_element_type=jnp.float32)
    sumsq_ref[...] += jnp.dot(onehot_t, f * f, preferred_element_type=jnp.float32)
    # count is a row-sum (XLU), not a matmul.
    cnt_ref[...] += jnp.sum(onehot_t, axis=1, keepdims=True)


def class_stats(features, labels_row, num_classes_p1, *, tn=512, n_par=2):
    """features: (NHW_pad, A), labels_row: (1, NHW_pad).  Returns summed stats."""
    nhw, A = features.shape
    assert labels_row.shape == (1, nhw)
    assert nhw % (tn * n_par) == 0
    n_inner = nhw // (tn * n_par)
    kern = functools.partial(_class_stats_kernel, num_classes_p1=num_classes_p1)
    stat_blk = pl.BlockSpec((1, num_classes_p1, A), lambda p, s: (p, 0, 0))
    cnt_blk = pl.BlockSpec((1, num_classes_p1, 1), lambda p, s: (p, 0, 0))
    psumf, psumsq, pcnt = pl.pallas_call(
        kern,
        out_shape=(
            jax.ShapeDtypeStruct((n_par, num_classes_p1, A), jnp.float32),
            jax.ShapeDtypeStruct((n_par, num_classes_p1, A), jnp.float32),
            jax.ShapeDtypeStruct((n_par, num_classes_p1, 1), jnp.float32),
        ),
        grid_spec=pltpu.PrefetchScalarGridSpec(
            num_scalar_prefetch=0,
            grid=(n_par, n_inner),
            in_specs=[
                pl.BlockSpec((tn, A), lambda p, s: (p * n_inner + s, 0)),
                pl.BlockSpec((1, tn), lambda p, s: (0, p * n_inner + s)),
            ],
            out_specs=(stat_blk, stat_blk, cnt_blk),
        ),
        compiler_params=pltpu.CompilerParams(
            dimension_semantics=("parallel", "arbitrary")),
    )(features, labels_row)
    return psumf.sum(0), psumsq.sum(0), pcnt.sum(0)


def _estimator_update(sumf, sumsq, cnt, old_cov, old_ave, old_amt):
    """Tiny O((C+1)*A) EstimatorCV finalize (plain JAX glue), mirrors PyTorch."""
    n = jnp.where(cnt == 0.0, 1.0, cnt)                       # (Cp1, 1)
    ave = sumf / n
    var = jnp.maximum(sumsq / n - ave * ave, 0.0)             # clamp tiny negatives
    w = cnt / (cnt + old_amt)                                 # 0/0 -> NaN (as in torch)
    w = jnp.where(jnp.isnan(w), 0.0, w)
    new_cov = old_cov * (1.0 - w) + var * w + w * (1.0 - w) * (old_ave - ave) ** 2
    new_ave = old_ave * (1.0 - w) + ave * w
    new_amt = old_amt + cnt
    return new_cov, new_ave, new_amt


# ----------------------------------------------------------------------------
# Kernel 2: aug = y + 0.5 * S[label]  (native (N, C, H*W) layout, lane-dense)
# ----------------------------------------------------------------------------
def _isda_aug_kernel(st_ref, lab_ref, y_ref, out_ref, *, num_classes):
    lab = lab_ref[...]                                        # (1, ts) int32
    ts = lab.shape[1]
    classes = lax.broadcasted_iota(jnp.int32, (num_classes, ts), 0)
    # label==255 (ignore) or padding matches no class -> sigma2 column is 0.
    onehot = (classes == lab).astype(jnp.float32)             # (C, ts)
    sig = jnp.dot(st_ref[...], onehot, preferred_element_type=jnp.float32)  # (C, ts)
    out_ref[...] = y_ref[...] + 0.5 * sig


def isda_aug(st, y_ncs, labels_row, *, ts):
    N, C, hw_pad = y_ncs.shape
    assert hw_pad % ts == 0
    n_sp = hw_pad // ts
    kern = functools.partial(_isda_aug_kernel, num_classes=C)
    return pl.pallas_call(
        kern,
        out_shape=jax.ShapeDtypeStruct((N, C, hw_pad), jnp.float32),
        grid_spec=pltpu.PrefetchScalarGridSpec(
            num_scalar_prefetch=0,
            grid=(N, n_sp),
            in_specs=[
                pl.BlockSpec((C, C), lambda n, t: (0, 0)),
                pl.BlockSpec((1, ts), lambda n, t: (0, n * n_sp + t)),
                pl.BlockSpec((1, C, ts), lambda n, t: (n, 0, t)),
            ],
            out_specs=pl.BlockSpec((1, C, ts), lambda n, t: (n, 0, t)),
        ),
        compiler_params=pltpu.CompilerParams(
            dimension_semantics=("parallel", "parallel")),
    )(st, labels_row, y_ncs)


def _sigma2_table(weight_m, cov_matrix, ratio):
    """S[l, c] = ratio * sum_a (W[c,a] - W[l,a])^2 * CV[l,a]; returns S^T (C, C)."""
    C, _ = weight_m.shape
    cv = cov_matrix[:C]                                       # row for ignore unused
    w2 = weight_m * weight_m
    t1 = cv @ w2.T                                            # sum_a CV[l,a] W[c,a]^2
    t2 = (weight_m * cv) @ weight_m.T                         # sum_a W[l,a] CV[l,a] W[c,a]
    t3 = jnp.sum(w2 * cv, axis=1, keepdims=True)              # sum_a W[l,a]^2 CV[l,a]
    s = ratio * (t1 - 2.0 * t2 + t3)                          # (C, C), indexed [l, c]
    return s.T.astype(jnp.float32)                            # [c, l] so sig = S^T @ onehot


# ----------------------------------------------------------------------------
# ISDALoss forward (functional state handling)
# ----------------------------------------------------------------------------
def _nearest_resize_labels(target_x, H, W):
    # F.interpolate(target.float()[:,None], (H,W), mode='nearest').long().squeeze()
    _, h_in, w_in = target_x.shape
    hi = jnp.floor(jnp.arange(H) * (h_in / H)).astype(jnp.int32)
    wi = jnp.floor(jnp.arange(W) * (w_in / W)).astype(jnp.int32)
    t = target_x.astype(jnp.float32)[:, hi, :][:, :, wi]
    return t.astype(jnp.int32)                                # (N, H, W)


class ISDALossPallas:
    def __init__(self, feature_num, class_num):
        self.feature_num = feature_num
        self.class_num = class_num
        cp1 = class_num + 1
        self.CoVariance = jnp.zeros((cp1, feature_num), jnp.float32)
        self.Ave = jnp.zeros((cp1, feature_num), jnp.float32)
        self.Amount = jnp.zeros((cp1, 1), jnp.float32)

    def forward(self, features, fc_weight_conv, y, target_x, ratio):
        N, A, H, W = features.shape
        C = self.class_num
        HW = H * W
        target = _nearest_resize_labels(target_x, H, W)        # (N, H, W)

        # ---- Kernel 1: per-class statistics over the NHW tokens ----
        # TODO(synk): features could be consumed in bf16 on v6e/v7x for MXU peak
        # (accumulation stays f32); kept f32 to match reference tolerance.
        feat_flat = jnp.transpose(features, (0, 2, 3, 1)).reshape(N * HW, A)
        lab_flat = target.reshape(N * HW).astype(jnp.int32)
        tn, n_par = 512, 2
        chunk = tn * n_par
        nhw_pad = _round_up(N * HW, chunk)
        if nhw_pad != N * HW:
            pad = nhw_pad - N * HW
            feat_flat = jnp.pad(feat_flat, ((0, pad), (0, 0)))
            lab_flat = jnp.pad(lab_flat, (0, pad), constant_values=-1)
        sumf, sumsq, cnt = class_stats(
            feat_flat, lab_flat.reshape(1, nhw_pad), C + 1, tn=tn, n_par=n_par)
        new_cov, new_ave, new_amt = _estimator_update(
            sumf, sumsq, cnt, self.CoVariance, self.Ave, self.Amount)
        self.CoVariance, self.Ave, self.Amount = new_cov, new_ave, new_amt

        # ---- Kernel 2: aug = y + 0.5 * sigma2(label), native NCHW layout ----
        weight_m = fc_weight_conv.reshape(C, A)
        st = _sigma2_table(weight_m, new_cov, ratio)           # (C, C) table, ratio baked in
        ts = min(512, _round_up(HW, 128))
        hw_pad = _round_up(HW, ts)
        y_ncs = y.reshape(N, C, HW).astype(jnp.float32)
        lab_ns = target.reshape(N, HW).astype(jnp.int32)
        if hw_pad != HW:
            y_ncs = jnp.pad(y_ncs, ((0, 0), (0, 0), (0, hw_pad - HW)))
            lab_ns = jnp.pad(lab_ns, ((0, 0), (0, hw_pad - HW)), constant_values=255)
        aug = isda_aug(st, y_ncs, lab_ns.reshape(1, N * hw_pad), ts=ts)
        return aug[:, :, :HW].reshape(N, C, H, W)


# ----------------------------------------------------------------------------
# Pure-JAX reference mirroring the PyTorch code (for verification)
# ----------------------------------------------------------------------------
def reference_forward(features, fc_weight_conv, y, target_x, ratio, class_num,
                      old_cov=None, old_ave=None, old_amt=None):
    N, A, H, W = features.shape
    C = class_num
    Cp1 = C + 1
    if old_cov is None:
        old_cov = jnp.zeros((Cp1, A), jnp.float32)
        old_ave = jnp.zeros((Cp1, A), jnp.float32)
        old_amt = jnp.zeros((Cp1, 1), jnp.float32)
    target = _nearest_resize_labels(target_x, H, W)
    feat = jnp.transpose(features, (0, 2, 3, 1)).reshape(N * H * W, A)
    yf = jnp.transpose(y, (0, 2, 3, 1)).reshape(N * H * W, C)
    lab = target.reshape(N * H * W)

    ignore = lab == 255
    lab_m = jnp.where(ignore, Cp1 - 1, lab)
    onehot = jax.nn.one_hot(lab_m, Cp1, dtype=jnp.float32)                # (NHW, Cp1)
    feats_by_sort = feat[:, None, :] * onehot[:, :, None]                 # (NHW, Cp1, A)
    amount_ca = jnp.broadcast_to(jnp.sum(onehot, 0)[:, None], (Cp1, A))
    amount_ca_c = jnp.where(amount_ca == 0, 1.0, amount_ca)
    ave = jnp.sum(feats_by_sort, 0) / amount_ca_c
    var_temp = jnp.sum((feats_by_sort - ave[None] * onehot[:, :, None]) ** 2, 0) / amount_ca_c
    sum_w = jnp.broadcast_to(jnp.sum(onehot, 0)[:, None], (Cp1, A))
    weight = sum_w / (sum_w + old_amt)
    weight = jnp.where(jnp.isnan(weight), 0.0, weight)
    additional = weight * (1 - weight) * (old_ave - ave) ** 2
    cov = old_cov * (1 - weight) + var_temp * weight + additional
    ave_new = old_ave * (1 - weight) + ave * weight
    amt_new = old_amt + jnp.sum(onehot, 0)[:, None]

    lab0 = jnp.where(ignore, 0, lab)
    w_m = fc_weight_conv.reshape(C, A)
    wlab = w_m[lab0]
    cvl = cov[lab0]
    sigma2 = ratio * jnp.sum((w_m[None] - wlab[:, None]) ** 2 * cvl[:, None, :], axis=2)
    aug = yf + 0.5 * sigma2 * (1.0 - ignore.astype(jnp.float32))[:, None]
    return (jnp.transpose(aug.reshape(N, H, W, C), (0, 3, 1, 2)),
            cov, ave_new, amt_new)


# ----------------------------------------------------------------------------
if __name__ == "__main__":
    key = jax.random.PRNGKey(0)
    ks = jax.random.split(key, 7)

    N, A, H, W = 2, 8, 16, 16          # feature_num = 8
    C = 4                              # class_num = 4
    h_t, w_t = 8, 8                    # target at lower resolution
    ratio = 0.5

    features = jax.random.normal(ks[0], (N, A, H, W), dtype=jnp.float32)
    y_logits = jax.random.normal(ks[1], (N, C, H, W), dtype=jnp.float32)
    fc_weight_conv = jax.random.normal(ks[2], (C, A, 1, 1), dtype=jnp.float32)
    target = jax.random.randint(ks[3], (N, h_t, w_t), 0, C, dtype=jnp.int32)
    ignore_mask = jax.random.uniform(ks[4], (N, h_t, w_t)) < 0.15
    target = jnp.where(ignore_mask, 255, target)

    loss_mod = ISDALossPallas(feature_num=A, class_num=C)
    out = loss_mod.forward(features, fc_weight_conv, y_logits, target, ratio)
    out = jax.block_until_ready(out)

    ref_out, ref_cov, ref_ave, ref_amt = reference_forward(
        features, fc_weight_conv, y_logits, target, ratio, C)
    assert out.shape == (N, C, H, W)
    assert jnp.allclose(out, ref_out, rtol=2e-3, atol=2e-3), "output mismatch"
    assert jnp.allclose(loss_mod.CoVariance, ref_cov, rtol=2e-3, atol=2e-3), "CoVariance mismatch"
    assert jnp.allclose(loss_mod.Ave, ref_ave, rtol=2e-3, atol=2e-3), "Ave mismatch"
    assert jnp.allclose(loss_mod.Amount, ref_amt, rtol=2e-3, atol=2e-3), "Amount mismatch"

    # Second call: exercise the running-state (non-zero Ave/Amount) update path.
    features2 = jax.random.normal(ks[5], (N, A, H, W), dtype=jnp.float32)
    target2 = jax.random.randint(ks[6], (N, h_t, w_t), 0, C, dtype=jnp.int32)
    out2 = loss_mod.forward(features2, fc_weight_conv, y_logits, target2, ratio)
    out2 = jax.block_until_ready(out2)
    ref_out2, ref_cov2, _, _ = reference_forward(
        features2, fc_weight_conv, y_logits, target2, ratio, C,
        old_cov=ref_cov, old_ave=ref_ave, old_amt=ref_amt)
    assert jnp.allclose(out2, ref_out2, rtol=2e-3, atol=2e-3), "output-2 mismatch"
    assert jnp.allclose(loss_mod.CoVariance, ref_cov2, rtol=2e-3, atol=2e-3), "CoVariance-2 mismatch"

    print("KERNEL_OK")
</pallas_src>

<mosaic_0001>
module attributes {stable_mosaic.version = 11 : i64} {
  func.func @_class_stats_kernel(%arg0: i32, %arg1: i32, %arg2: memref<512x8xf32, #tpu.memory_space<vmem>>, %arg3: memref<1x512xi32, #tpu.memory_space<vmem>>, %arg4: memref<1x5x8xf32, #tpu.memory_space<vmem>>, %arg5: memref<1x5x8xf32, #tpu.memory_space<vmem>>, %arg6: memref<1x5x1xf32, #tpu.memory_space<vmem>>) attributes {dimension_semantics = [#tpu.dimension_semantics<parallel>, #tpu.dimension_semantics<arbitrary>], iteration_bounds = array<i64: 2, 1>, scalar_prefetch = 0 : i64, scratch_operands = 0 : i64, tpu.core_type = #tpu.core_type<tc>, window_params = [{transform_indices = @transform_0, window_bounds = array<i64: 512, 8>}, {transform_indices = @transform_1, window_bounds = array<i64: 1, 512>}, {transform_indices = @transform_2, window_bounds = array<i64: 1, 5, 8>}, {transform_indices = @transform_3, window_bounds = array<i64: 1, 5, 8>}, {transform_indices = @transform_4, window_bounds = array<i64: 1, 5, 1>}]} {
    %c0_i32 = arith.constant 0 : i32
    %0 = arith.cmpi eq, %arg1, %c0_i32 : i32
    %1 = arith.extui %0 : i1 to i32
    %c0_i32_0 = arith.constant 0 : i32
    %2 = arith.cmpi ne, %1, %c0_i32_0 : i32
    scf.if %2 {
      %cst_24 = arith.constant 0.000000e+00 : f32
      %31 = vector.broadcast %cst_24 : f32 to vector<1x5x8xf32>
      %c0_25 = arith.constant 0 : index
      %c0_26 = arith.constant 0 : index
      %c0_27 = arith.constant 0 : index
      %32 = vector.load %arg4[%c0_25, %c0_26, %c0_27] : memref<1x5x8xf32, #tpu.memory_space<vmem>>, vector<1x5x8xf32>
      tpu.vector_store %arg4[%c0_25, %c0_26, %c0_27], %31 {strides = array<i32>} : memref<1x5x8xf32, #tpu.memory_space<vmem>>, vector<1x5x8xf32>,
      %cst_28 = arith.constant 0.000000e+00 : f32
      %33 = vector.broadcast %cst_28 : f32 to vector<1x5x8xf32>
      %c0_29 = arith.constant 0 : index
      %c0_30 = arith.constant 0 : index
      %c0_31 = arith.constant 0 : index
      %34 = vector.load %arg5[%c0_29, %c0_30, %c0_31] : memref<1x5x8xf32, #tpu.memory_space<vmem>>, vector<1x5x8xf32>
      tpu.vector_store %arg5[%c0_29, %c0_30, %c0_31], %33 {strides = array<i32>} : memref<1x5x8xf32, #tpu.memory_space<vmem>>, vector<1x5x8xf32>,
      %cst_32 = arith.constant 0.000000e+00 : f32
      %35 = vector.broadcast %cst_32 : f32 to vector<1x5x1xf32>
      %c0_33 = arith.constant 0 : index
      %c0_34 = arith.constant 0 : index
      %c0_35 = arith.constant 0 : index
      %36 = vector.load %arg6[%c0_33, %c0_34, %c0_35] : memref<1x5x1xf32, #tpu.memory_space<vmem>>, vector<1x5x1xf32>
      tpu.vector_store %arg6[%c0_33, %c0_34, %c0_35], %35 {strides = array<i32>} : memref<1x5x1xf32, #tpu.memory_space<vmem>>, vector<1x5x1xf32>,
    } else {
    }
    %c0 = arith.constant 0 : index
    %c0_1 = arith.constant 0 : index
    %3 = vector.load %arg3[%c0, %c0_1] : memref<1x512xi32, #tpu.memory_space<vmem>>, vector<1x512xi32>
    %c255_i32 = arith.constant 255 : i32
    %4 = vector.broadcast %c255_i32 : i32 to vector<1x512xi32>
    %5 = arith.cmpi eq, %3, %4 : vector<1x512xi32>
    %c4_i32 = arith.constant 4 : i32
    %6 = vector.broadcast %c4_i32 : i32 to vector<1x512xi32>
    %7 = arith.select %5, %6, %3 : vector<1x512xi1>, vector<1x512xi32>
    %8 = tpu.iota {dimensions = array<i32: 0>} : vector<5x512xi32>
    %9 = vector.broadcast %7 : vector<1x512xi32> to vector<5x512xi32>
    %10 = arith.cmpi eq, %8, %9 : vector<5x512xi32>
    %11 = arith.extui %10 : vector<5x512xi1> to vector<5x512xi32>
    %12 = arith.sitofp %11 : vector<5x512xi32> to vector<5x512xf32>
    %c0_2 = arith.constant 0 : index
    %c0_3 = arith.constant 0 : index
    %13 = vector.load %arg2[%c0_2, %c0_3] : memref<512x8xf32, #tpu.memory_space<vmem>>, vector<512x8xf32>
    %c0_4 = arith.constant 0 : index
    %c0_5 = arith.constant 0 : index
    %c0_6 = arith.constant 0 : index
    %14 = vector.load %arg4[%c0_4, %c0_5, %c0_6] : memref<1x5x8xf32, #tpu.memory_space<vmem>>, vector<1x5x8xf32>
    %cst = arith.constant dense<0.000000e+00> : vector<5x8xf32>
    %15 = tpu.matmul %12, %13, %cst {dimension_numbers = #tpu.dot_dimension_numbers<[1], [0], [0], [1], [0, 0, 1, 1], [], []>} : vector<5x512xf32>, vector<512x8xf32>, vector<5x8xf32> -> vector<5x8xf32>
    %16 = vector.shape_cast %15 : vector<5x8xf32> to vector<1x5x8xf32>
    %17 = arith.addf %14, %16 : vector<1x5x8xf32>
    %c0_7 = arith.constant 0 : index
    %c0_8 = arith.constant 0 : index
    %c0_9 = arith.constant 0 : index
    %18 = vector.load %arg4[%c0_7, %c0_8, %c0_9] : memref<1x5x8xf32, #tpu.memory_space<vmem>>, vector<1x5x8xf32>
    tpu.vector_store %arg4[%c0_7, %c0_8, %c0_9], %17 {strides = array<i32>} : memref<1x5x8xf32, #tpu.memory_space<vmem>>, vector<1x5x8xf32>,
    %c0_10 = arith.constant 0 : index
    %c0_11 = arith.constant 0 : index
    %c0_12 = arith.constant 0 : index
    %19 = vector.load %arg5[%c0_10, %c0_11, %c0_12] : memref<1x5x8xf32, #tpu.memory_space<vmem>>, vector<1x5x8xf32>
    %20 = arith.mulf %13, %13 : vector<512x8xf32>
    %cst_13 = arith.constant dense<0.000000e+00> : vector<5x8xf32>
    %21 = tpu.matmul %12, %20, %cst_13 {dimension_numbers = #tpu.dot_dimension_numbers<[1], [0], [0], [1], [0, 0, 1, 1], [], []>} : vector<5x512xf32>, vector<512x8xf32>, vector<5x8xf32> -> vector<5x8xf32>
    %22 = vector.shape_cast %21 : vector<5x8xf32> to vector<1x5x8xf32>
    %23 = arith.addf %19, %22 : vector<1x5x8xf32>
    %c0_14 = arith.constant 0 : index
    %c0_15 = arith.constant 0 : index
    %c0_16 = arith.constant 0 : index
    %24 = vector.load %arg5[%c0_14, %c0_15, %c0_16] : memref<1x5x8xf32, #tpu.memory_space<vmem>>, vector<1x5x8xf32>
    tpu.vector_store %arg5[%c0_14, %c0_15, %c0_16], %23 {strides = array<i32>} : memref<1x5x8xf32, #tpu.memory_space<vmem>>, vector<1x5x8xf32>,
    %c0_17 = arith.constant 0 : index
    %c0_18 = arith.constant 0 : index
    %c0_19 = arith.constant 0 : index
    %25 = vector.load %arg6[%c0_17, %c0_18, %c0_19] : memref<1x5x1xf32, #tpu.memory_space<vmem>>, vector<1x5x1xf32>
    %cst_20 = arith.constant dense<0.000000e+00> : vector<5xf32>
    %26 = vector.multi_reduction <add>, %12, %cst_20 [1] : vector<5x512xf32> to vector<5xf32>
    %27 = vector.shape_cast %26 : vector<5xf32> to vector<5x1xf32>
    %28 = vector.shape_cast %27 : vector<5x1xf32> to vector<1x5x1xf32>
    %29 = arith.addf %25, %28 : vector<1x5x1xf32>
    %c0_21 = arith.constant 0 : index
    %c0_22 = arith.constant 0 : index
    %c0_23 = arith.constant 0 : index
    %30 = vector.load %arg6[%c0_21, %c0_22, %c0_23] : memref<1x5x1xf32, #tpu.memory_space<vmem>>, vector<1x5x1xf32>
    tpu.vector_store %arg6[%c0_21, %c0_22, %c0_23], %29 {strides = array<i32>} : memref<1x5x1xf32, #tpu.memory_space<vmem>>, vector<1x5x1xf32>,
    return
  }
  func.func @transform_0(%arg0: i32, %arg1: i32) -> (i32, i32) {
    %c1_i32 = arith.constant 1 : i32
    %0 = arith.muli %arg0, %c1_i32 : i32
    %1 = arith.addi %0, %arg1 : i32
    %c0_i32 = arith.constant 0 : i32
    %c0_i32_0 = arith.constant 0 : i32
    return %1, %c0_i32 : i32, i32
  }
  func.func @transform_1(%arg0: i32, %arg1: i32) -> (i32, i32) {
    %c1_i32 = arith.constant 1 : i32
    %0 = arith.muli %arg0, %c1_i32 : i32
    %1 = arith.addi %0, %arg1 : i32
    %c0_i32 = arith.constant 0 : i32
    %c0_i32_0 = arith.constant 0 : i32
    return %c0_i32, %1 : i32, i32
  }
  func.func @transform_2(%arg0: i32, %arg1: i32) -> (i32, i32, i32) {
    %c0_i32 = arith.constant 0 : i32
    %c0_i32_0 = arith.constant 0 : i32
    %c0_i32_1 = arith.constant 0 : i32
    return %arg0, %c0_i32, %c0_i32_0 : i32, i32, i32
  }
  func.func @transform_3(%arg0: i32, %arg1: i32) -> (i32, i32, i32) {
    %c0_i32 = arith.constant 0 : i32
    %c0_i32_0 = arith.constant 0 : i32
    %c0_i32_1 = arith.constant 0 : i32
    return %arg0, %c0_i32, %c0_i32_0 : i32, i32, i32
  }
  func.func @transform_4(%arg0: i32, %arg1: i32) -> (i32, i32, i32) {
    %c0_i32 = arith.constant 0 : i32
    %c0_i32_0 = arith.constant 0 : i32
    %c0_i32_1 = arith.constant 0 : i32
    return %arg0, %c0_i32, %c0_i32_0 : i32, i32, i32
  }
}

</mosaic_0001>

<llo_original>
// kernel: tpu_custom_call.1
$region0: #{tpu_custom_call.1}
  #allocation0 [shape = 'u32[]', space=smem, size = 0x4, offset = 0x4, fixed_abs, tag = 'smem constant byte address 0x4 - core index']
  #allocation1 [shape = 'u32[144,128]{1,0:T(1,128)}', space=vmem, size = 0x12000, scoped, tag = 'internal scratch']
  %s0 = inlined_call_operand.vmem [shape: f32[1024,8], index: 0, kind: input, shape index: {}]
  %s1 = inlined_call_operand.vmem [shape: s32[1,1024], index: 1, kind: input, shape index: {}]
  %s2 = inlined_call_operand.vmem [shape: f32[2,5,8], index: 2, kind: output, shape index: {0}]
  %s3 = inlined_call_operand.vmem [shape: f32[2,5,8], index: 3, kind: output, shape index: {1}]
  %s4 = inlined_call_operand.vmem [shape: f32[2,5,1], index: 4, kind: output, shape index: {2}]
  %5 = xla_tuple %s2, %s3, %s4
  %s6 = sld [smem:[#allocation0]]
  $region61: #{tpu_custom_call.1} parent=0
    _
  %s8 = ssub.s32 1, %s6
  %s9 = scalar_select 0, %s8, %s6
  loop: start=0, step=1, limit=4
  $region2: #{tpu_custom_call.1} parent=0 // loop_pre_header
    _
  $region3: #{tpu_custom_call.1} parent=0 // loop_header
    %s11 = sphi 0, %s15
    %p12 = scmp.ge.s32.totalorder %s11, 4
    %s18 = sphi 0, %s30
    %s19 = sphi 0, %s26
    %s20 = sphi 0, %s18
    %s21 = sphi 0, %s19
    %s22 = sphi 0, %s20
    %s23 = sphi 0, %s21
    %s35 = sphi 0, %s37
    %s38 = sphi 0, %s35
    %s39 = sphi 0, %s38
    %s55 = sphi 0, %s39
    %s63 = sphi 0, %s65
    %s66 = sphi 0, %s63
    %s67 = sphi 0, %s66
    %s83 = sphi 0, %s67
    %s89 = sphi 0, %s91
    %s92 = sphi 0, %s89
    %s93 = sphi 0, %s92
    %s109 = sphi 0, %s93
    %s115 = sphi 0, %s117
    %s118 = sphi 0, %s115
    %s119 = sphi 0, %s118
    %s135 = sphi 0, %s119
    %s141 = sphi 0, %s143
    %s144 = sphi 0, %s141
    %s145 = sphi 0, %s144
    %s161 = sphi 0, %s145
  $region4: #{tpu_custom_call.1} parent=0 // loop_header_branch
    %14 = sbr.rel (%p12) target = $region8
  $region5: #{tpu_custom_call.1} parent=0 // loop_body
    %s16 = ssub.s32 %s11, 1
    %s17 = ssub.s32 %s11, 2
    %s24 = sadd.s32 1, %s19
    %p25 = scmp.ge.s32.totalorder %s24, 1
    %s26 = scalar_select %p25, 0, %s24
    %s27 = sadd.s32 1, %s18
    %s28 = scalar_select %p25, %s27, %s18
    %p29 = scmp.ge.s32.totalorder %s28, 2
    %s30 = scalar_select %p29, 0, %s28
    %s31 = sadd.s32 %s18, %s19
    %s32 = sadd.s32 %s30, %s26
    %s33 = ssub.s32 %s31, %s32
    %p34 = scmp.eq.s32.totalorder %s33, 0
    %s36 = sadd.s32 %s35, 1
    %s37 = scalar_select %p34, %s35, %s36
    %p40 = pneg %p34
    %p41 = scmp.eq.s32.totalorder %s11, 1
    %p42 = por %p40, %p41
    %p43 = scmp.ne.s32.totalorder %s35, %s38
    %p44 = scmp.eq.s32.totalorder %s11, 0
    %p45 = por %p43, %p44
    %p46 = scmp.ne.s32.totalorder %s35, %s38
    %p47 = scmp.eq.s32.totalorder %s16, 1
    %p48 = por %p46, %p47
    %p49 = scmp.ne.s32.totalorder %s38, %s39
    %p50 = scmp.eq.s32.totalorder %s16, 0
    %p51 = por %p49, %p50
    %p52 = scmp.ne.s32.totalorder %s38, %s39
    %p53 = scmp.eq.s32.totalorder %s17, 1
    %p54 = por %p52, %p53
    %p56 = scmp.ne.s32.totalorder %s39, %s55
    %p57 = scmp.eq.s32.totalorder %s17, 0
    %p58 = por %p56, %p57
    %s59 = sadd.s32 %s18, %s19
    %s60 = sadd.s32 %s30, %s26
    %s61 = ssub.s32 %s59, %s60
    %p62 = scmp.eq.s32.totalorder %s61, 0
    %s64 = sadd.s32 %s63, 1
    %s65 = scalar_select %p62, %s63, %s64
    %p68 = pneg %p62
    %p69 = scmp.eq.s32.totalorder %s11, 1
    %p70 = por %p68, %p69
    %p71 = scmp.ne.s32.totalorder %s63, %s66
    %p72 = scmp.eq.s32.totalorder %s11, 0
    %p73 = por %p71, %p72
    %p74 = scmp.ne.s32.totalorder %s63, %s66
    %p75 = scmp.eq.s32.totalorder %s16, 1
    %p76 = por %p74, %p75
    %p77 = scmp.ne.s32.totalorder %s66, %s67
    %p78 = scmp.eq.s32.totalorder %s16, 0
    %p79 = por %p77, %p78
    %p80 = scmp.ne.s32.totalorder %s66, %s67
    %p81 = scmp.eq.s32.totalorder %s17, 1
    %p82 = por %p80, %p81
    %p84 = scmp.ne.s32.totalorder %s67, %s83
    %p85 = scmp.eq.s32.totalorder %s17, 0
    %p86 = por %p84, %p85
    %s87 = ssub.s32 %s18, %s30
    %p88 = scmp.eq.s32.totalorder %s87, 0
    %s90 = sadd.s32 %s89, 1
    %s91 = scalar_select %p88, %s89, %s90
    %p94 = pneg %p88
    %p95 = scmp.eq.s32.totalorder %s11, 1
    %p96 = por %p94, %p95
    %p97 = scmp.ne.s32.totalorder %s89, %s92
    %p98 = scmp.eq.s32.totalorder %s11, 0
    %p99 = por %p97, %p98
    %p100 = scmp.ne.s32.totalorder %s89, %s92
    %p101 = scmp.eq.s32.totalorder %s16, 1
    %p102 = por %p100, %p101
    %p103 = scmp.ne.s32.totalorder %s92, %s93
    %p104 = scmp.eq.s32.totalorder %s16, 0
    %p105 = por %p103, %p104
    %p106 = scmp.ne.s32.totalorder %s92, %s93
    %p107 = scmp.eq.s32.totalorder %s17, 1
    %p108 = por %p106, %p107
    %p110 = scmp.ne.s32.totalorder %s93, %s109
    %p111 = scmp.eq.s32.totalorder %s17, 0
    %p112 = por %p110, %p111
    %s113 = ssub.s32 %s18, %s30
    %p114 = scmp.eq.s32.totalorder %s113, 0
    %s116 = sadd.s32 %s115, 1
    %s117 = scalar_select %p114, %s115, %s116
    %p120 = pneg %p114
    %p121 = scmp.eq.s32.totalorder %s11, 1
    %p122 = por %p120, %p121
    %p123 = scmp.ne.s32.totalorder %s115, %s118
    %p124 = scmp.eq.s32.totalorder %s11, 0
    %p125 = por %p123, %p124
    %p126 = scmp.ne.s32.totalorder %s115, %s118
    %p127 = scmp.eq.s32.totalorder %s16, 1
    %p128 = por %p126, %p127
    %p129 = scmp.ne.s32.totalorder %s118, %s119
    %p130 = scmp.eq.s32.totalorder %s16, 0
    %p131 = por %p129, %p130
    %p132 = scmp.ne.s32.totalorder %s118, %s119
    %p133 = scmp.eq.s32.totalorder %s17, 1
    %p134 = por %p132, %p133
    %p136 = scmp.ne.s32.totalorder %s119, %s135
    %p137 = scmp.eq.s32.totalorder %s17, 0
    %p138 = por %p136, %p137
    %s139 = ssub.s32 %s18, %s30
    %p140 = scmp.eq.s32.totalorder %s139, 0
    %s142 = sadd.s32 %s141, 1
    %s143 = scalar_select %p140, %s141, %s142
    %p146 = pneg %p140
    %p147 = scmp.eq.s32.totalorder %s11, 1
    %p148 = por %p146, %p147
    %p149 = scmp.ne.s32.totalorder %s141, %s144
    %p150 = scmp.eq.s32.totalorder %s11, 0
    %p151 = por %p149, %p150
    %p152 = scmp.ne.s32.totalorder %s141, %s144
    %p153 = scmp.eq.s32.totalorder %s16, 1
    %p154 = por %p152, %p153
    %p155 = scmp.ne.s32.totalorder %s144, %s145
    %p156 = scmp.eq.s32.totalorder %s16, 0
    %p157 = por %p155, %p156
    %p158 = scmp.ne.s32.totalorder %s144, %s145
    %p159 = scmp.eq.s32.totalorder %s17, 1
    %p160 = por %p158, %p159
    %p162 = scmp.ne.s32.totalorder %s145, %s161
    %p163 = scmp.eq.s32.totalorder %s17, 0
    %p164 = por %p162, %p163
    %p165 = scmp.le.s32.totalorder 1, %s11
    %p166 = scmp.lt.s32.totalorder %s11, 3
    %p167 = pnand %p165, %p166
    %p168 = pneg %p167
    // Predicated region
    $region9: #{tpu_custom_call.1} parent=5 // pred_check
      _
    $region10: #{tpu_custom_call.1} parent=5 // pred_check_branch
      %170 = sbr.rel (%p167) target = $region12
    $region11: #{tpu_custom_call.1} parent=5 // pred_region
      %s171 = ssub.s32 %s11, 1
    $region12: #{tpu_custom_call.1} parent=5 // pred_fallthru
      _
    %p172 = scmp.lt.s32.totalorder %s11, 2
    // Predicated region
    $region13: #{tpu_custom_call.1} parent=5 // pred_check
      %p173 = pneg %p172
    $region14: #{tpu_custom_call.1} parent=5 // pred_check_branch
      %175 = sbr.rel (%p173) target = $region16
    $region15: #{tpu_custom_call.1} parent=5 // pred_region
      // Predicated region
      $region17: #{tpu_custom_call.1} parent=15 // pred_check
        %p176 = pneg %p45
      $region18: #{tpu_custom_call.1} parent=15 // pred_check_branch
        %178 = sbr.rel (%p176) target = $region20
      $region19: #{tpu_custom_call.1} parent=15 // pred_region
        %s179 = sadd.s32 %s18, %s19
        %s180 = smul.u32 64, %s179
        %p181 = scmp.lt.s32.totalorder %s180, 127
        %s182 = scalar_select %p181, %s180, 127
        %s183 = smul.addr %s182, 8
        %s184 = scalar_lea.vmem %s0, %s183
        %s185 = sadd.s32 %s18, %s19
        %s186 = smul.u32 64, %s185
      $region20: #{tpu_custom_call.1} parent=15 // pred_fallthru
        _
      // Predicated region
      $region21: #{tpu_custom_call.1} parent=15 // pred_check
        %p187 = pneg %p73
      $region22: #{tpu_custom_call.1} parent=15 // pred_check_branch
        %189 = sbr.rel (%p187) target = $region24
      $region23: #{tpu_custom_call.1} parent=15 // pred_region
        %s190 = sadd.s32 %s18, %s19
        %s191 = smul.u32 4, %s190
        %p192 = scmp.lt.s32.totalorder %s191, 7
        %s193 = scalar_select %p192, %s191, 7
        %s194 = scalar_lea.vmem %s1, %s193
        %s195 = sadd.s32 %s18, %s19
        %s196 = smul.u32 4, %s195
      $region24: #{tpu_custom_call.1} parent=15 // pred_fallthru
        _
    $region16: #{tpu_custom_call.1} parent=5 // pred_fallthru
      _
    %p197 = scmp.le.s32.totalorder 1, %s11
    %p198 = scmp.lt.s32.totalorder %s11, 3
    %p199 = pnand %p197, %p198
    %p200 = pneg %p199
    // Predicated region
    $region25: #{tpu_custom_call.1} parent=5 // pred_check
      _
    $region26: #{tpu_custom_call.1} parent=5 // pred_check_branch
      %202 = sbr.rel (%p199) target = $region28
    $region27: #{tpu_custom_call.1} parent=5 // pred_region
      %s203 = ssub.s32 %s11, 1
      %s204 = sadd.s32 %s20, %s21
      %s205 = smul.u32 64, %s204
      %p206 = scmp.lt.s32.totalorder %s205, 127
      %s207 = scalar_select %p206, %s205, 127
      %s208 = smul.addr %s207, 8
      %s209 = scalar_lea.vmem %s0, %s208
      %p210 = pneg %p51
      %p211 = pneg %p48
      %s212 = sadd.s32 %s20, %s21
      %s213 = smul.u32 4, %s212
      %p214 = scmp.lt.s32.totalorder %s213, 7
      %s215 = scalar_select %p214, %s213, 7
      %s216 = scalar_lea.vmem %s1, %s215
      %p217 = pneg %p79
      %p218 = pneg %p76
      %p219 = pneg %p105
      %p220 = pneg %p102
      %p221 = scmp.lt.s32.totalorder %s20, 1
      %s222 = scalar_select %p221, %s20, 1
      %s223 = smul.addr %s222, 8
      %s224 = scalar_lea.vmem %s2, %s223
      %p225 = pneg %p131
      %p226 = pneg %p128
      %p227 = scmp.lt.s32.totalorder %s20, 1
      %s228 = scalar_select %p227, %s20, 1
      %s229 = smul.addr %s228, 8
      %s230 = scalar_lea.vmem %s3, %s229
      %p231 = pneg %p157
      %p232 = pneg %p154
      %p233 = scmp.lt.s32.totalorder %s20, 1
      %s234 = scalar_select %p233, %s20, 1
      %s235 = smul.addr %s234, 8
      %s236 = scalar_lea.vmem %s4, %s235
      %s237 = sadd.s32 %s20, %s21
      %s238 = smul.u32 64, %s237
      %p239 = scmp.lt.s32.totalorder %s238, 127
      %s240 = scalar_select %p239, %s238, 127
      %s241 = smul.addr %s240, 8
      %s242 = scalar_lea.vmem %s0, %s241
      %s243 = sadd.s32 %s20, %s21
      %s244 = smul.u32 64, %s243
      %s245 = sadd.s32 %s20, %s21
      %s246 = smul.u32 4, %s245
      %p247 = scmp.lt.s32.totalorder %s246, 7
      %s248 = scalar_select %p247, %s246, 7
      %s249 = scalar_lea.vmem %s1, %s248
      %s250 = sadd.s32 %s20, %s21
      %s251 = smul.u32 4, %s250
      %p252 = scmp.lt.s32.totalorder %s20, 1
      %s253 = scalar_select %p252, %s20, 1
      %s254 = smul.addr %s253, 8
      %s255 = scalar_lea.vmem %s2, %s254
      %p256 = scmp.lt.s32.totalorder %s20, 1
      %s257 = scalar_select %p256, %s20, 1
      %s258 = smul.addr %s257, 8
      %s259 = scalar_lea.vmem %s3, %s258
      %p260 = scmp.lt.s32.totalorder %s20, 1
      %s261 = scalar_select %p260, %s20, 1
      %s262 = smul.addr %s261, 8
      %s263 = scalar_lea.vmem %s4, %s262
      %p264 = scmp.eq.s32.totalorder %s21, 0
      // Predicated region
      $region29: #{tpu_custom_call.1} parent=27 // pred_check
        %p265 = pneg %p264
      $region30: #{tpu_custom_call.1} parent=27 // pred_check_branch
        %267 = sbr.rel (%p265) target = $region32
      $region31: #{tpu_custom_call.1} parent=27 // pred_region
        %vm268 = vcmask 61440
        %269 = vst.msk [vmem:[%s255] sm:$0x1f] %vm268, 0.0
        %270 = vst.msk [vmem:[%s259] sm:$0x1f] %vm268, 0.0
        %vm271 = vcmask 4096
        %272 = vst.msk [vmem:[%s263] sm:$0x1f] %vm271, 0.0
      $region32: #{tpu_custom_call.1} parent=27 // pred_fallthru
        _
      %v273 = vld [vmem:[%s249] sm:$0xf]
      %vm274 = vcmp.eq.s32.totalorder %v273, 255
      %v275 = vsel %vm274, 4, %v273
      %v276 = vlaneseq
      %v277 = vshrl.u32 %v276, 7
      %v278 = vlaneseq
      %v279 = vshrl.u32 %v278, 7
      %v280 = vsub.s32 0, %v279
      %v281 = vrot.slane %v275, %v280
      %v282 = vlaneseq
      %v283 = vshrl.u32 %v282, 7
      %v284 = vsub.s32 1, %v283
      %v285 = vrot.slane %v275, %v284
      %v286 = vlaneseq
      %v287 = vshrl.u32 %v286, 7
      %v288 = vsub.s32 2, %v287
      %v289 = vrot.slane %v275, %v288
      %v290 = vlaneseq
      %v291 = vshrl.u32 %v290, 7
      %v292 = vsub.s32 3, %v291
      %v293 = vrot.slane %v275, %v292
      %vm294 = vcmp.eq.s32.totalorder %v277, %v281
      %vm295 = vcmp.eq.s32.totalorder %v277, %v285
      %vm296 = vcmp.eq.s32.totalorder %v277, %v289
      %vm297 = vcmp.eq.s32.totalorder %v277, %v293
      %v298 = vsel %vm294, 1, 0
      %v299 = vsel %vm295, 1, 0
      %v300 = vsel %vm296, 1, 0
      %v301 = vsel %vm297, 1, 0
      %v302 = vcvt.s32.f32 %v298
      %v303 = vcvt.s32.f32 %v299
      %v304 = vcvt.s32.f32 %v300
      %v305 = vcvt.s32.f32 %v301
      %v306 = vld [vmem:[%s242] sm:$0xff]
      %v307 = vld [vmem:[%s242 + $0x8] sm:$0xff]
      %v308 = vld [vmem:[%s242 + $0x10] sm:$0xff]
      %v309 = vld [vmem:[%s242 + $0x18] sm:$0xff]
      %v310 = vld [vmem:[%s242 + $0x20] sm:$0xff]
      %v311 = vld [vmem:[%s242 + $0x28] sm:$0xff]
      %v312 = vld [vmem:[%s242 + $0x30] sm:$0xff]
      %v313 = vld [vmem:[%s242 + $0x38] sm:$0xff]
      %v314 = vld [vmem:[%s242 + $0x40] sm:$0xff]
      %v315 = vld [vmem:[%s242 + $0x48] sm:$0xff]
      %v316 = vld [vmem:[%s242 + $0x50] sm:$0xff]
      %v317 = vld [vmem:[%s242 + $0x58] sm:$0xff]
      %v318 = vld [vmem:[%s242 + $0x60] sm:$0xff]
      %v319 = vld [vmem:[%s242 + $0x68] sm:$0xff]
      %v320 = vld [vmem:[%s242 + $0x70] sm:$0xff]
      %v321 = vld [vmem:[%s242 + $0x78] sm:$0xff]
      %v322 = vld [vmem:[%s242 + $0x80] sm:$0xff]
      %v323 = vld [vmem:[%s242 + $0x88] sm:$0xff]
      %v324 = vld [vmem:[%s242 + $0x90] sm:$0xff]
      %v325 = vld [vmem:[%s242 + $0x98] sm:$0xff]
      %v326 = vld [vmem:[%s242 + $0xa0] sm:$0xff]
      %v327 = vld [vmem:[%s242 + $0xa8] sm:$0xff]
      %v328 = vld [vmem:[%s242 + $0xb0] sm:$0xff]
      %v329 = vld [vmem:[%s242 + $0xb8] sm:$0xff]
      %v330 = vld [vmem:[%s242 + $0xc0] sm:$0xff]
      %v331 = vld [vmem:[%s242 + $0xc8] sm:$0xff]
      %v332 = vld [vmem:[%s242 + $0xd0] sm:$0xff]
      %v333 = vld [vmem:[%s242 + $0xd8] sm:$0xff]
      %v334 = vld [vmem:[%s242 + $0xe0] sm:$0xff]
      %v335 = vld [vmem:[%s242 + $0xe8] sm:$0xff]
      %v336 = vld [vmem:[%s242 + $0xf0] sm:$0xff]
      %v337 = vld [vmem:[%s242 + $0xf8] sm:$0xff]
      %v338 = vld [vmem:[%s242 + $0x100] sm:$0xff]
      %v339 = vld [vmem:[%s242 + $0x108] sm:$0xff]
      %v340 = vld [vmem:[%s242 + $0x110] sm:$0xff]
      %v341 = vld [vmem:[%s242 + $0x118] sm:$0xff]
      %v342 = vld [vmem:[%s242 + $0x120] sm:$0xff]
      %v343 = vld [vmem:[%s242 + $0x128] sm:$0xff]
      %v344 = vld [vmem:[%s242 + $0x130] sm:$0xff]
      %v345 = vld [vmem:[%s242 + $0x138] sm:$0xff]
      %v346 = vld [vmem:[%s242 + $0x140] sm:$0xff]
      %v347 = vld [vmem:[%s242 + $0x148] sm:$0xff]
      %v348 = vld [vmem:[%s242 + $0x150] sm:$0xff]
      %v349 = vld [vmem:[%s242 + $0x158] sm:$0xff]
      %v350 = vld [vmem:[%s242 + $0x160] sm:$0xff]
      %v351 = vld [vmem:[%s242 + $0x168] sm:$0xff]
      %v352 = vld [vmem:[%s242 + $0x170] sm:$0xff]
      %v353 = vld [vmem:[%s242 + $0x178] sm:$0xff]
      %v354 = vld [vmem:[%s242 + $0x180] sm:$0xff]
      %v355 = vld [vmem:[%s242 + $0x188] sm:$0xff]
      %v356 = vld [vmem:[%s242 + $0x190] sm:$0xff]
      %v357 = vld [vmem:[%s242 + $0x198] sm:$0xff]
      %v358 = vld [vmem:[%s242 + $0x1a0] sm:$0xff]
      %v359 = vld [vmem:[%s242 + $0x1a8] sm:$0xff]
      %v360 = vld [vmem:[%s242 + $0x1b0] sm:$0xff]
      %v361 = vld [vmem:[%s242 + $0x1b8] sm:$0xff]
      %v362 = vld [vmem:[%s242 + $0x1c0] sm:$0xff]
      %v363 = vld [vmem:[%s242 + $0x1c8] sm:$0xff]
      %v364 = vld [vmem:[%s242 + $0x1d0] sm:$0xff]
      %v365 = vld [vmem:[%s242 + $0x1d8] sm:$0xff]
      %v366 = vld [vmem:[%s242 + $0x1e0] sm:$0xff]
      %v367 = vld [vmem:[%s242 + $0x1e8] sm:$0xff]
      %v368 = vld [vmem:[%s242 + $0x1f0] sm:$0xff]
      %v369 = vld [vmem:[%s242 + $0x1f8] sm:$0xff]
      %v370 = vld [vmem:[%s255] sm:$0x1f]
      %371 = vmatprep.subr.mxu0 0.0
      %372 = vmatpush1.msra.mxu0 %v321
      %373 = vmatprep.subr.mxu0 0.0
      %374 = vmatpush1.msra.mxu0 %v320
      %375 = vmatprep.subr.mxu0 0.0
      %376 = vmatpush1.msra.mxu0 %v319
      %377 = vmatprep.subr.mxu0 0.0
      %378 = vmatpush1.msra.mxu0 %v318
      %379 = vmatprep.subr.mxu0 0.0
      %380 = vmatpush1.msra.mxu0 %v317
      %381 = vmatprep.subr.mxu0 0.0
      %382 = vmatpush1.msra.mxu0 %v316
      %383 = vmatprep.subr.mxu0 0.0
      %384 = vmatpush1.msra.mxu0 %v315
      %385 = vmatprep.subr.mxu0 0.0
      %386 = vmatpush1.msra.mxu0 %v314
      %387 = vmatprep.subr.mxu0 0.0
      %388 = vmatpush1.msra.mxu0 %v313
      %389 = vmatprep.subr.mxu0 0.0
      %390 = vmatpush1.msra.mxu0 %v312
      %391 = vmatprep.subr.mxu0 0.0
      %392 = vmatpush1.msra.mxu0 %v311
      %393 = vmatprep.subr.mxu0 0.0
      %394 = vmatpush1.msra.mxu0 %v310
      %395 = vmatprep.subr.mxu0 0.0
      %396 = vmatpush1.msra.mxu0 %v309
      %397 = vmatprep.subr.mxu0 0.0
      %398 = vmatpush1.msra.mxu0 %v308
      %399 = vmatprep.subr.mxu0 0.0
      %400 = vmatpush1.msra.mxu0 %v307
      %401 = vmatprep.subr.mxu0 0.0
      %402 = vmatpush1.msra.mxu0 %v306
      %403 = vmatprep.subr.mxu0 0.0
      %404 = vmatpush2.msra.mxu0 %v337
      %405 = vmatprep.subr.mxu0 0.0
      %406 = vmatpush2.msra.mxu0 %v336
      %407 = vmatprep.subr.mxu0 0.0
      %408 = vmatpush2.msra.mxu0 %v335
      %409 = vmatprep.subr.mxu0 0.0
      %410 = vmatpush2.msra.mxu0 %v334
      %411 = vmatprep.subr.mxu0 0.0
      %412 = vmatpush2.msra.mxu0 %v333
      %413 = vmatprep.subr.mxu0 0.0
      %414 = vmatpush2.msra.mxu0 %v332
      %415 = vmatprep.subr.mxu0 0.0
      %416 = vmatpush2.msra.mxu0 %v331
      %417 = vmatprep.subr.mxu0 0.0
      %418 = vmatpush2.msra.mxu0 %v330
      %419 = vmatprep.subr.mxu0 0.0
      %420 = vmatpush2.msra.mxu0 %v329
      %421 = vmatprep.subr.mxu0 0.0
      %422 = vmatpush2.msra.mxu0 %v328
      %423 = vmatprep.subr.mxu0 0.0
      %424 = vmatpush2.msra.mxu0 %v327
      %425 = vmatprep.subr.mxu0 0.0
      %426 = vmatpush2.msra.mxu0 %v326
      %427 = vmatprep.subr.mxu0 0.0
      %428 = vmatpush2.msra.mxu0 %v325
      %429 = vmatprep.subr.mxu0 0.0
      %430 = vmatpush2.msra.mxu0 %v324
      %431 = vmatprep.subr.mxu0 0.0
      %432 = vmatpush2.msra.mxu0 %v323
      %433 = vmatprep.subr.mxu0 0.0
      %434 = vmatpush2.msra.mxu0 %v322
      %435 = vmatprep.mubr.f32.mxu0 %v303
      %436 = vmatmul.mubr.f32.gmra.mxu0 %v302
      %v437 = vpop.f32.mrf.mxu0
      %v438 = vadd.f32 0.0, %v437
      %v439 = vpop.f32.mrf.mxu0
      %440 = vdwg.mxu0
      %441 = vmatprep.subr.mxu0 0.0
      %442 = vmatpush1.msra.mxu0 %v353
      %443 = vmatprep.subr.mxu0 0.0
      %444 = vmatpush1.msra.mxu0 %v352
      %445 = vmatprep.subr.mxu0 0.0
      %446 = vmatpush1.msra.mxu0 %v351
      %447 = vmatprep.subr.mxu0 0.0
      %448 = vmatpush1.msra.mxu0 %v350
      %449 = vmatprep.subr.mxu0 0.0
      %450 = vmatpush1.msra.mxu0 %v349
      %451 = vmatprep.subr.mxu0 0.0
      %452 = vmatpush1.msra.mxu0 %v348
      %453 = vmatprep.subr.mxu0 0.0
      %454 = vmatpush1.msra.mxu0 %v347
      %455 = vmatprep.subr.mxu0 0.0
      %456 = vmatpush1.msra.mxu0 %v346
      %457 = vmatprep.subr.mxu0 0.0
      %458 = vmatpush1.msra.mxu0 %v345
      %459 = vmatprep.subr.mxu0 0.0
      %460 = vmatpush1.msra.mxu0 %v344
      %461 = vmatprep.subr.mxu0 0.0
      %462 = vmatpush1.msra.mxu0 %v343
      %463 = vmatprep.subr.mxu0 0.0
      %464 = vmatpush1.msra.mxu0 %v342
      %465 = vmatprep.subr.mxu0 0.0
      %466 = vmatpush1.msra.mxu0 %v341
      %467 = vmatprep.subr.mxu0 0.0
      %468 = vmatpush1.msra.mxu0 %v340
      %469 = vmatprep.subr.mxu0 0.0
      %470 = vmatpush1.msra.mxu0 %v339
      %471 = vmatprep.subr.mxu0 0.0
      %472 = vmatpush1.msra.mxu0 %v338
      %473 = vmatprep.subr.mxu0 0.0
      %474 = vmatpush2.msra.mxu0 %v369
      %475 = vmatprep.subr.mxu0 0.0
      %476 = vmatpush2.msra.mxu0 %v368
      %477 = vmatprep.subr.mxu0 0.0
      %478 = vmatpush2.msra.mxu0 %v367
      %479 = vmatprep.subr.mxu0 0.0
      %480 = vmatpush2.msra.mxu0 %v366
      %481 = vmatprep.subr.mxu0 0.0
      %482 = vmatpush2.msra.mxu0 %v365
      %483 = vmatprep.subr.mxu0 0.0
      %484 = vmatpush2.msra.mxu0 %v364
      %485 = vmatprep.subr.mxu0 0.0
      %486 = vmatpush2.msra.mxu0 %v363
      %487 = vmatprep.subr.mxu0 0.0
      %488 = vmatpush2.msra.mxu0 %v362
      %489 = vmatprep.subr.mxu0 0.0
      %490 = vmatpush2.msra.mxu0 %v361
      %491 = vmatprep.subr.mxu0 0.0
      %492 = vmatpush2.msra.mxu0 %v360
      %493 = vmatprep.subr.mxu0 0.0
      %494 = vmatpush2.msra.mxu0 %v359
      %495 = vmatprep.subr.mxu0 0.0
      %496 = vmatpush2.msra.mxu0 %v358
      %497 = vmatprep.subr.mxu0 0.0
      %498 = vmatpush2.msra.mxu0 %v357
      %499 = vmatprep.subr.mxu0 0.0
      %500 = vmatpush2.msra.mxu0 %v356
      %501 = vmatprep.subr.mxu0 0.0
      %502 = vmatpush2.msra.mxu0 %v355
      %503 = vmatprep.subr.mxu0 0.0
      %504 = vmatpush2.msra.mxu0 %v354
      %505 = vmatprep.mubr.f32.mxu0 %v305
      %506 = vmatmul.mubr.f32.gmra.mxu0 %v304
      %v507 = vpop.f32.mrf.mxu0
      %v508 = vadd.f32 %v438, %v507
      %v509 = vpop.f32.mrf.mxu0
      %510 = vdwg.mxu0
      %v511 = vadd.f32 %v370, %v508
      %vm512 = vcmask 61440
      %513 = vst.msk [vmem:[%s255] sm:$0x1f] %vm512, %v511
      %v514 = vld [vmem:[%s259] sm:$0x1f]
      %v515 = vmul.f32 %v306, %v306
      %v516 = vmul.f32 %v307, %v307
      %v517 = vmul.f32 %v308, %v308
      %v518 = vmul.f32 %v309, %v309
      %v519 = vmul.f32 %v310, %v310
      %v520 = vmul.f32 %v311, %v311
      %v521 = vmul.f32 %v312, %v312
      %v522 = vmul.f32 %v313, %v313
      %v523 = vmul.f32 %v314, %v314
      %v524 = vmul.f32 %v315, %v315
      %v525 = vmul.f32 %v316, %v316
      %v526 = vmul.f32 %v317, %v317
      %v527 = vmul.f32 %v318, %v318
      %v528 = vmul.f32 %v319, %v319
      %v529 = vmul.f32 %v320, %v320
      %v530 = vmul.f32 %v321, %v321
      %v531 = vmul.f32 %v322, %v322
      %v532 = vmul.f32 %v323, %v323
      %v533 = vmul.f32 %v324, %v324
      %v534 = vmul.f32 %v325, %v325
      %v535 = vmul.f32 %v326, %v326
      %v536 = vmul.f32 %v327, %v327
      %v537 = vmul.f32 %v328, %v328
      %v538 = vmul.f32 %v329, %v329
      %v539 = vmul.f32 %v330, %v330
      %v540 = vmul.f32 %v331, %v331
      %v541 = vmul.f32 %v332, %v332
      %v542 = vmul.f32 %v333, %v333
      %v543 = vmul.f32 %v334, %v334
      %v544 = vmul.f32 %v335, %v335
      %v545 = vmul.f32 %v336, %v336
      %v546 = vmul.f32 %v337, %v337
      %v547 = vmul.f32 %v338, %v338
      %v548 = vmul.f32 %v339, %v339
      %v549 = vmul.f32 %v340, %v340
      %v550 = vmul.f32 %v341, %v341
      %v551 = vmul.f32 %v342, %v342
      %v552 = vmul.f32 %v343, %v343
      %v553 = vmul.f32 %v344, %v344
      %v554 = vmul.f32 %v345, %v345
      %v555 = vmul.f32 %v346, %v346
      %v556 = vmul.f32 %v347, %v347
      %v557 = vmul.f32 %v348, %v348
      %v558 = vmul.f32 %v349, %v349
      %v559 = vmul.f32 %v350, %v350
      %v560 = vmul.f32 %v351, %v351
      %v561 = vmul.f32 %v352, %v352
      %v562 = vmul.f32 %v353, %v353
      %v563 = vmul.f32 %v354, %v354
      %v564 = vmul.f32 %v355, %v355
      %v565 = vmul.f32 %v356, %v356
      %v566 = vmul.f32 %v357, %v357
      %v567 = vmul.f32 %v358, %v358
      %v568 = vmul.f32 %v359, %v359
      %v569 = vmul.f32 %v360, %v360
      %v570 = vmul.f32 %v361, %v361
      %v571 = vmul.f32 %v362, %v362
      %v572 = vmul.f32 %v363, %v363
      %v573 = vmul.f32 %v364, %v364
      %v574 = vmul.f32 %v365, %v365
      %v575 = vmul.f32 %v366, %v366
      %v576 = vmul.f32 %v367, %v367
      %v577 = vmul.f32 %v368, %v368
      %v578 = vmul.f32 %v369, %v369
      %579 = vmatprep.subr.mxu0 0.0
      %580 = vmatpush1.msra.mxu0 %v530
      %581 = vmatprep.subr.mxu0 0.0
      %582 = vmatpush1.msra.mxu0 %v529
      %583 = vmatprep.subr.mxu0 0.0
      %584 = vmatpush1.msra.mxu0 %v528
      %585 = vmatprep.subr.mxu0 0.0
      %586 = vmatpush1.msra.mxu0 %v527
      %587 = vmatprep.subr.mxu0 0.0
      %588 = vmatpush1.msra.mxu0 %v526
      %589 = vmatprep.subr.mxu0 0.0
      %590 = vmatpush1.msra.mxu0 %v525
      %591 = vmatprep.subr.mxu0 0.0
      %592 = vmatpush1.msra.mxu0 %v524
      %593 = vmatprep.subr.mxu0 0.0
      %594 = vmatpush1.msra.mxu0 %v523
      %595 = vmatprep.subr.mxu0 0.0
      %596 = vmatpush1.msra.mxu0 %v522
      %597 = vmatprep.subr.mxu0 0.0
      %598 = vmatpush1.msra.mxu0 %v521
      %599 = vmatprep.subr.mxu0 0.0
      %600 = vmatpush1.msra.mxu0 %v520
      %601 = vmatprep.subr.mxu0 0.0
      %602 = vmatpush1.msra.mxu0 %v519
      %603 = vmatprep.subr.mxu0 0.0
      %604 = vmatpush1.msra.mxu0 %v518
      %605 = vmatprep.subr.mxu0 0.0
      %606 = vmatpush1.msra.mxu0 %v517
      %607 = vmatprep.subr.mxu0 0.0
      %608 = vmatpush1.msra.mxu0 %v516
      %609 = vmatprep.subr.mxu0 0.0
      %610 = vmatpush1.msra.mxu0 %v515
      %611 = vmatprep.subr.mxu0 0.0
      %612 = vmatpush2.msra.mxu0 %v546
      %613 = vmatprep.subr.mxu0 0.0
      %614 = vmatpush2.msra.mxu0 %v545
      %615 = vmatprep.subr.mxu0 0.0
      %616 = vmatpush2.msra.mxu0 %v544
      %617 = vmatprep.subr.mxu0 0.0
      %618 = vmatpush2.msra.mxu0 %v543
      %619 = vmatprep.subr.mxu0 0.0
      %620 = vmatpush2.msra.mxu0 %v542
      %621 = vmatprep.subr.mxu0 0.0
      %622 = vmatpush2.msra.mxu0 %v541
      %623 = vmatprep.subr.mxu0 0.0
      %624 = vmatpush2.msra.mxu0 %v540
      %625 = vmatprep.subr.mxu0 0.0
      %626 = vmatpush2.msra.mxu0 %v539
      %627 = vmatprep.subr.mxu0 0.0
      %628 = vmatpush2.msra.mxu0 %v538
      %629 = vmatprep.subr.mxu0 0.0
      %630 = vmatpush2.msra.mxu0 %v537
      %631 = vmatprep.subr.mxu0 0.0
      %632 = vmatpush2.msra.mxu0 %v536
      %633 = vmatprep.subr.mxu0 0.0
      %634 = vmatpush2.msra.mxu0 %v535
      %635 = vmatprep.subr.mxu0 0.0
      %636 = vmatpush2.msra.mxu0 %v534
      %637 = vmatprep.subr.mxu0 0.0
      %638 = vmatpush2.msra.mxu0 %v533
      %639 = vmatprep.subr.mxu0 0.0
      %640 = vmatpush2.msra.mxu0 %v532
      %641 = vmatprep.subr.mxu0 0.0
      %642 = vmatpush2.msra.mxu0 %v531
      %643 = vmatprep.mubr.f32.mxu0 %v303
      %644 = vmatmul.mubr.f32.gmra.mxu0 %v302
      %v645 = vpop.f32.mrf.mxu0
      %v646 = vadd.f32 0.0, %v645
      %v647 = vpop.f32.mrf.mxu0
      %648 = vdwg.mxu0
      %649 = vmatprep.subr.mxu0 0.0
      %650 = vmatpush1.msra.mxu0 %v562
      %651 = vmatprep.subr.mxu0 0.0
      %652 = vmatpush1.msra.mxu0 %v561
      %653 = vmatprep.subr.mxu0 0.0
      %654 = vmatpush1.msra.mxu0 %v560
      %655 = vmatprep.subr.mxu0 0.0
      %656 = vmatpush1.msra.mxu0 %v559
      %657 = vmatprep.subr.mxu0 0.0
      %658 = vmatpush1.msra.mxu0 %v558
      %659 = vmatprep.subr.mxu0 0.0
      %660 = vmatpush1.msra.mxu0 %v557
      %661 = vmatprep.subr.mxu0 0.0
      %662 = vmatpush1.msra.mxu0 %v556
      %663 = vmatprep.subr.mxu0 0.0
      %664 = vmatpush1.msra.mxu0 %v555
      %665 = vmatprep.subr.mxu0 0.0
      %666 = vmatpush1.msra.mxu0 %v554
      %667 = vmatprep.subr.mxu0 0.0
      %668 = vmatpush1.msra.mxu0 %v553
      %669 = vmatprep.subr.mxu0 0.0
      %670 = vmatpush1.msra.mxu0 %v552
      %671 = vmatprep.subr.mxu0 0.0
      %672 = vmatpush1.msra.mxu0 %v551
      %673 = vmatprep.subr.mxu0 0.0
      %674 = vmatpush1.msra.mxu0 %v550
      %675 = vmatprep.subr.mxu0 0.0
      %676 = vmatpush1.msra.mxu0 %v549
      %677 = vmatprep.subr.mxu0 0.0
      %678 = vmatpush1.msra.mxu0 %v548
      %679 = vmatprep.subr.mxu0 0.0
      %680 = vmatpush1.msra.mxu0 %v547
      %681 = vmatprep.subr.mxu0 0.0
      %682 = vmatpush2.msra.mxu0 %v578
      %683 = vmatprep.subr.mxu0 0.0
      %684 = vmatpush2.msra.mxu0 %v577
      %685 = vmatprep.subr.mxu0 0.0
      %686 = vmatpush2.msra.mxu0 %v576
      %687 = vmatprep.subr.mxu0 0.0
      %688 = vmatpush2.msra.mxu0 %v575
      %689 = vmatprep.subr.mxu0 0.0
      %690 = vmatpush2.msra.mxu0 %v574
      %691 = vmatprep.subr.mxu0 0.0
      %692 = vmatpush2.msra.mxu0 %v573
      %693 = vmatprep.subr.mxu0 0.0
      %694 = vmatpush2.msra.mxu0 %v572
      %695 = vmatprep.subr.mxu0 0.0
      %696 = vmatpush2.msra.mxu0 %v571
      %697 = vmatprep.subr.mxu0 0.0
      %698 = vmatpush2.msra.mxu0 %v570
      %699 = vmatprep.subr.mxu0 0.0
      %700 = vmatpush2.msra.mxu0 %v569
      %701 = vmatprep.subr.mxu0 0.0
      %702 = vmatpush2.msra.mxu0 %v568
      %703 = vmatprep.subr.mxu0 0.0
      %704 = vmatpush2.msra.mxu0 %v567
      %705 = vmatprep.subr.mxu0 0.0
      %706 = vmatpush2.msra.mxu0 %v566
      %707 = vmatprep.subr.mxu0 0.0
      %708 = vmatpush2.msra.mxu0 %v565
      %709 = vmatprep.subr.mxu0 0.0
      %710 = vmatpush2.msra.mxu0 %v564
      %711 = vmatprep.subr.mxu0 0.0
      %712 = vmatpush2.msra.mxu0 %v563
      %713 = vmatprep.mubr.f32.mxu0 %v305
      %714 = vmatmul.mubr.f32.gmra.mxu0 %v304
      %v715 = vpop.f32.mrf.mxu0
      %v716 = vadd.f32 %v646, %v715
      %v717 = vpop.f32.mrf.mxu0
      %718 = vdwg.mxu0
      %v719 = vadd.f32 %v514, %v716
      %720 = vst.msk [vmem:[%s259] sm:$0x1f] %vm512, %v719
      %v721 = vld [vmem:[%s263] sm:$0x1f]
      %vm722 = vcmask 1044480
      %v723 = vsel %vm722, %v302, 0.0
      %v724 = vsel %vm722, %v303, 0.0
      %v725 = vadd.f32 %v723, %v724
      %v726 = vsel %vm722, %v304, 0.0
      %v727 = vadd.f32 %v725, %v726
      %v728 = vsel %vm722, %v305, 0.0
      %v729 = vadd.f32 %v727, %v728
      %730 = vadd.xlane.f32.xlu0 %v729
      %v731 = vpop.xlane.xlu0 %730
      %v732 = vadd.f32 %v721, %v731
      %vm733 = vcmask 4096
      %734 = vst.msk [vmem:[%s263] sm:$0x1f] %vm733, %v732
      %p735 = scmp.lt.s32.totalorder %s20, 1
      %s736 = scalar_select %p735, %s20, 1
      %s737 = smul.addr %s736, 8
      %s738 = scalar_lea.vmem %s2, %s737
      %p739 = scmp.lt.s32.totalorder %s20, 1
      %s740 = scalar_select %p739, %s20, 1
      %s741 = smul.addr %s740, 8
      %s742 = scalar_lea.vmem %s3, %s741
      %p743 = scmp.lt.s32.totalorder %s20, 1
      %s744 = scalar_select %p743, %s20, 1
      %s745 = smul.addr %s744, 8
      %s746 = scalar_lea.vmem %s4, %s745
      // Predicated region
      $region33: #{tpu_custom_call.1} parent=27 // pred_check
        %p747 = pneg %p102
      $region34: #{tpu_custom_call.1} parent=27 // pred_check_branch
        %749 = sbr.rel (%p747) target = $region36
      $region35: #{tpu_custom_call.1} parent=27 // pred_region
        _
      $region36: #{tpu_custom_call.1} parent=27 // pred_fallthru
        _
      // Predicated region
      $region37: #{tpu_custom_call.1} parent=27 // pred_check
        %p750 = pneg %p128
      $region38: #{tpu_custom_call.1} parent=27 // pred_check_branch
        %752 = sbr.rel (%p750) target = $region40
      $region39: #{tpu_custom_call.1} parent=27 // pred_region
        _
      $region40: #{tpu_custom_call.1} parent=27 // pred_fallthru
        _
      // Predicated region
      $region41: #{tpu_custom_call.1} parent=27 // pred_check
        %p753 = pneg %p154
      $region42: #{tpu_custom_call.1} parent=27 // pred_check_branch
        %755 = sbr.rel (%p753) target = $region44
      $region43: #{tpu_custom_call.1} parent=27 // pred_region
        _
      $region44: #{tpu_custom_call.1} parent=27 // pred_fallthru
        _
    $region28: #{tpu_custom_call.1} parent=5 // pred_fallthru
      _
    %p756 = scmp.le.s32.totalorder 2, %s11
    // Predicated region
    $region45: #{tpu_custom_call.1} parent=5 // pred_check
      %p757 = pneg %p756
    $region46: #{tpu_custom_call.1} parent=5 // pred_check_branch
      %759 = sbr.rel (%p757) target = $region48
    $region47: #{tpu_custom_call.1} parent=5 // pred_region
      %s760 = ssub.s32 %s11, 2
      // Predicated region
      $region49: #{tpu_custom_call.1} parent=47 // pred_check
        %p761 = pneg %p108
      $region50: #{tpu_custom_call.1} parent=47 // pred_check_branch
        %763 = sbr.rel (%p761) target = $region52
      $region51: #{tpu_custom_call.1} parent=47 // pred_region
        %p764 = scmp.lt.s32.totalorder %s22, 1
        %s765 = scalar_select %p764, %s22, 1
        %s766 = smul.addr %s765, 8
        %s767 = scalar_lea.vmem %s2, %s766
      $region52: #{tpu_custom_call.1} parent=47 // pred_fallthru
        _
      // Predicated region
      $region53: #{tpu_custom_call.1} parent=47 // pred_check
        %p768 = pneg %p134
      $region54: #{tpu_custom_call.1} parent=47 // pred_check_branch
        %770 = sbr.rel (%p768) target = $region56
      $region55: #{tpu_custom_call.1} parent=47 // pred_region
        %p771 = scmp.lt.s32.totalorder %s22, 1
        %s772 = scalar_select %p771, %s22, 1
        %s773 = smul.addr %s772, 8
        %s774 = scalar_lea.vmem %s3, %s773
      $region56: #{tpu_custom_call.1} parent=47 // pred_fallthru
        _
      // Predicated region
      $region57: #{tpu_custom_call.1} parent=47 // pred_check
        %p775 = pneg %p160
      $region58: #{tpu_custom_call.1} parent=47 // pred_check_branch
        %777 = sbr.rel (%p775) target = $region60
      $region59: #{tpu_custom_call.1} parent=47 // pred_region
        %p778 = scmp.lt.s32.totalorder %s22, 1
        %s779 = scalar_select %p778, %s22, 1
        %s780 = smul.addr %s779, 8
        %s781 = scalar_lea.vmem %s4, %s780
      $region60: #{tpu_custom_call.1} parent=47 // pred_fallthru
        _
    $region48: #{tpu_custom_call.1} parent=5 // pred_fallthru
      _
  $region6: #{tpu_custom_call.1} parent=0 // loop_footer
    %s15 = sadd.s32 1, %s11
  $region7: #{tpu_custom_call.1} parent=0 // loop_footer_branch
    %10 = sbr.rel target = $region3
  $region8: #{tpu_custom_call.1} parent=0 // loop_exit
    _

</llo_original>
